<compile_context>
chip_gen: v7x
topology: tpu7x:2x2x1
jax: 0.10.0
libtpu: 0.0.40
codegen_flags: <defaults>
</compile_context>

<pallas_src>
import jax
import jax.numpy as jnp
from jax.experimental import pallas as pl
from jax.experimental.pallas import tpu as pltpu


def _emos_kernel(idx_ref, f_ref, tab_ref, o_ref):
    # idx_ref: (1, TB)    int32 flat row indices into the parameter table.
    # f_ref:   (F, TB)    features, batch on lanes (lane-dense).
    # tab_ref: (F+1, NF)  transposed weight table, bias as the last row
    #                     (fully resident in VMEM across the whole grid).
    # o_ref:   (1, TB)    lane-dense predictions.
    n_flat = tab_ref.shape[1]
    tb = idx_ref.shape[1]

    # One-hot gather on the MXU: column j of g is
    #   [weights[flat_idx[j], :], bias[flat_idx[j]]].
    rows = jax.lax.broadcasted_iota(jnp.int32, (n_flat, tb), 0)
    onehot = (rows == idx_ref[...]).astype(jnp.float32)              # (NF, TB)
    g = jnp.dot(tab_ref[...], onehot,
                preferred_element_type=jnp.float32)                  # (F+1, TB)

    # (weights * features).sum(-1) + bias  -- sublane reduce over the F rows.
    w = g[:-1, :]                                                    # (F, TB)
    b = g[-1:, :]                                                    # (1, TB)
    o_ref[...] = jnp.sum(w * f_ref[...], axis=0, keepdims=True) + b


def yearly_emos_forward(features, station_ids, forecast_id, step_id,
                        weights, biases, n_forecast_daily, n_steps_daily,
                        block_b=2048):
    """Pallas implementation of YearlyEMOS.forward.

    features:    (B, F) float
    station_ids: (B,)   int   (0 <= id < n_stations)
    forecast_id: (B,)   int   (>= 0, reduced mod n_forecast_daily)
    step_id:     (B,)   int   (>= 0, reduced mod n_steps_daily)
    weights:     (n_stations, n_forecast_daily, n_steps_daily, F)
    biases:      (n_stations, n_forecast_daily, n_steps_daily, 1)
    returns:     (B,) float32
    """
    B, F = features.shape
    n_stations = weights.shape[0]
    n_flat = n_stations * n_forecast_daily * n_steps_daily

    # Flattened gather index: (station, forecast % nf, step % ns).
    fid = forecast_id.astype(jnp.int32) % n_forecast_daily
    sid = step_id.astype(jnp.int32) % n_steps_daily
    flat_idx = (station_ids.astype(jnp.int32)
                * (n_forecast_daily * n_steps_daily)
                + fid * n_steps_daily + sid)
    idx2 = flat_idx.reshape(1, B)

    # Parameter table, feature-major, with the bias folded in as the last row.
    wT = weights.reshape(n_flat, F).T.astype(jnp.float32)            # (F, NF)
    bT = biases.reshape(1, n_flat).astype(jnp.float32)               # (1, NF)
    tab = jnp.concatenate([wT, bT], axis=0)                          # (F+1, NF)

    # Features transposed so the batch axis is lane-dense (layout plumbing;
    # keeps the in-kernel reduce on sublanes and the output stores dense).
    featT = features.T.astype(jnp.float32)                           # (F, B)

    # Lane-block size: multiple of 128, large enough to amortize per-step
    # overhead, capped so the (NF, TB) one-hot intermediate stays <= ~4 MiB.
    cap = max(128, ((4 << 20) // (4 * n_flat)) // 128 * 128)
    tb = max(128, (min(int(block_b), cap) // 128) * 128)
    if B <= tb:
        tb = B          # single block == full array (no (8,128) constraint)
    grid = (pl.cdiv(B, tb),)

    out = pl.pallas_call(
        _emos_kernel,
        out_shape=jax.ShapeDtypeStruct((1, B), jnp.float32),
        grid=grid,
        in_specs=[
            pl.BlockSpec((1, tb), lambda i: (0, i)),                 # indices
            pl.BlockSpec((F, tb), lambda i: (0, i)),                 # features
            pl.BlockSpec((F + 1, n_flat), lambda i: (0, 0)),         # table
        ],
        out_specs=pl.BlockSpec((1, tb), lambda i: (0, i)),
        compiler_params=pltpu.CompilerParams(
            dimension_semantics=("parallel",)),
    )(idx2, featT, tab)

    return out[0]


if __name__ == "__main__":
    n_stations, in_features = 6, 8
    n_forecast_daily, n_steps_daily = 2, 8
    B = 300  # non-multiple of the block size -> exercises the ragged tail

    key = jax.random.PRNGKey(0)
    kw, kb, kf, ks, kfc, kst = jax.random.split(key, 6)
    weights = jax.random.normal(
        kw, (n_stations, n_forecast_daily, n_steps_daily, in_features),
        jnp.float32)
    biases = jax.random.normal(
        kb, (n_stations, n_forecast_daily, n_steps_daily, 1), jnp.float32)
    features = jax.random.normal(kf, (B, in_features), jnp.float32)
    station_ids = jax.random.randint(ks, (B,), 0, n_stations)
    forecast_id = jax.random.randint(kfc, (B,), 0, 17)   # arbitrary, gets % 2
    step_id = jax.random.randint(kst, (B,), 0, 29)       # arbitrary, gets % 8

    pred = yearly_emos_forward(features, station_ids, forecast_id, step_id,
                               weights, biases, n_forecast_daily, n_steps_daily,
                               block_b=256)   # small demo -> 2 grid blocks
    pred = jax.block_until_ready(pred)

    # Pure-JAX reference (mirrors the PyTorch forward).
    fid = forecast_id % n_forecast_daily
    sid = step_id % n_steps_daily
    w = weights[station_ids, fid, sid]
    b = biases[station_ids, fid, sid]
    ref = (w * features).sum(-1) + b.squeeze(-1)

    assert pred.shape == (B,)
    assert jnp.allclose(pred, ref, atol=1e-5, rtol=1e-5), (pred, ref)
    print("KERNEL_OK")
</pallas_src>

<mosaic_0001>
module attributes {stable_mosaic.version = 11 : i64} {
  func.func @_emos_kernel(%arg0: i32, %arg1: memref<1x256xi32, #tpu.memory_space<vmem>>, %arg2: memref<8x256xf32, #tpu.memory_space<vmem>>, %arg3: memref<9x96xf32, #tpu.memory_space<vmem>>, %arg4: memref<1x256xf32, #tpu.memory_space<vmem>>) attributes {dimension_semantics = [#tpu.dimension_semantics<parallel>], iteration_bounds = array<i64: 2>, scalar_prefetch = 0 : i64, scratch_operands = 0 : i64, tpu.core_type = #tpu.core_type<tc>, window_params = [{transform_indices = @transform_0, window_bounds = array<i64: 1, 256>}, {transform_indices = @transform_1, window_bounds = array<i64: 8, 256>}, {pipeline_mode = #tpu.pipeline_mode<synchronous>, transform_indices = @transform_2, window_bounds = array<i64: 9, 96>}, {transform_indices = @transform_3, window_bounds = array<i64: 1, 256>}]} {
    %0 = tpu.iota {dimensions = array<i32: 0>} : vector<96x256xi32>
    %c0 = arith.constant 0 : index
    %c0_0 = arith.constant 0 : index
    %1 = vector.load %arg1[%c0, %c0_0] : memref<1x256xi32, #tpu.memory_space<vmem>>, vector<1x256xi32>
    %2 = vector.broadcast %1 : vector<1x256xi32> to vector<96x256xi32>
    %3 = arith.cmpi eq, %0, %2 : vector<96x256xi32>
    %4 = arith.extui %3 : vector<96x256xi1> to vector<96x256xi32>
    %5 = arith.sitofp %4 : vector<96x256xi32> to vector<96x256xf32>
    %c0_1 = arith.constant 0 : index
    %c0_2 = arith.constant 0 : index
    %6 = vector.load %arg3[%c0_1, %c0_2] : memref<9x96xf32, #tpu.memory_space<vmem>>, vector<9x96xf32>
    %cst = arith.constant dense<0.000000e+00> : vector<9x256xf32>
    %7 = tpu.matmul %6, %5, %cst {dimension_numbers = #tpu.dot_dimension_numbers<[1], [0], [0], [1], [0, 0, 1, 1], [], []>} : vector<9x96xf32>, vector<96x256xf32>, vector<9x256xf32> -> vector<9x256xf32>
    %8 = vector.extract_strided_slice %7 {offsets = [0, 0], sizes = [8, 256], strides = [1, 1]} : vector<9x256xf32> to vector<8x256xf32>
    %9 = vector.extract_strided_slice %7 {offsets = [8, 0], sizes = [1, 256], strides = [1, 1]} : vector<9x256xf32> to vector<1x256xf32>
    %c0_3 = arith.constant 0 : index
    %c0_4 = arith.constant 0 : index
    %10 = vector.load %arg2[%c0_3, %c0_4] : memref<8x256xf32, #tpu.memory_space<vmem>>, vector<8x256xf32>
    %11 = arith.mulf %8, %10 : vector<8x256xf32>
    %cst_5 = arith.constant dense<0.000000e+00> : vector<256xf32>
    %12 = vector.multi_reduction <add>, %11, %cst_5 [0] : vector<8x256xf32> to vector<256xf32>
    %13 = vector.shape_cast %12 : vector<256xf32> to vector<1x256xf32>
    %14 = arith.addf %13, %9 : vector<1x256xf32>
    %c0_6 = arith.constant 0 : index
    %c0_7 = arith.constant 0 : index
    %15 = vector.load %arg4[%c0_6, %c0_7] : memref<1x256xf32, #tpu.memory_space<vmem>>, vector<1x256xf32>
    tpu.vector_store %arg4[%c0_6, %c0_7], %14 {strides = array<i32>} : memref<1x256xf32, #tpu.memory_space<vmem>>, vector<1x256xf32>,
    return
  }
  func.func @transform_0(%arg0: i32) -> (i32, i32) {
    %c0_i32 = arith.constant 0 : i32
    %c0_i32_0 = arith.constant 0 : i32
    return %c0_i32, %arg0 : i32, i32
  }
  func.func @transform_1(%arg0: i32) -> (i32, i32) {
    %c0_i32 = arith.constant 0 : i32
    %c0_i32_0 = arith.constant 0 : i32
    return %c0_i32, %arg0 : i32, i32
  }
  func.func @transform_2(%arg0: i32) -> (i32, i32) {
    %c0_i32 = arith.constant 0 : i32
    %c0_i32_0 = arith.constant 0 : i32
    %c0_i32_1 = arith.constant 0 : i32
    return %c0_i32, %c0_i32_0 : i32, i32
  }
  func.func @transform_3(%arg0: i32) -> (i32, i32) {
    %c0_i32 = arith.constant 0 : i32
    %c0_i32_0 = arith.constant 0 : i32
    return %c0_i32, %arg0 : i32, i32
  }
}

</mosaic_0001>

<llo_original>
// kernel: tpu_custom_call.1
$region0: #{tpu_custom_call.1}
  #allocation0 [shape = 'u32[]', space=smem, size = 0x4, offset = 0x4, fixed_abs, tag = 'smem constant byte address 0x4 - core index']
  #allocation1 [shape = 'u32[144,128]{1,0:T(1,128)}', space=vmem, size = 0x12000, scoped, tag = 'internal scratch']
  %s0 = inlined_call_operand.hbm [shape: s32[1,300], index: 0, kind: input, shape index: {}]
  %s1 = inlined_call_operand.hbm [shape: f32[8,300], index: 1, kind: input, shape index: {}]
  %s2 = inlined_call_operand.hbm [shape: f32[9,96], index: 2, kind: input, shape index: {}]
  %s3 = inlined_call_operand.hbm [shape: f32[1,300], index: 3, kind: output, shape index: {}]
  %s4 = sld [smem:[#allocation0]]
  $region57: #{tpu_custom_call.1} parent=0
    _
  %s6 = ssub.s32 1, %s4
  %s7 = scalar_select 0, %s6, %s4
  $region1: #{tpu_custom_call.1} parent=0
    #allocation2 [shape = 'u8[2048]{0}', space=vmem, size = 0x800, scoped, tag = 'input window, operand 0']
    #allocation3 [shape = 's32[2]{0}', space=sflag, size = 0x8, scoped, tag = 'scoped memory for tpu_custom_call.1']
    #allocation4 [shape = 's32[2]{0}', space=sflag, size = 0x8, scoped, tag = 'scoped memory for tpu_custom_call.1']
    #allocation5 [shape = 'u8[16384]{0}', space=vmem, size = 0x4000, scoped, tag = 'input window, operand 1']
    #allocation6 [shape = 's32[2]{0}', space=sflag, size = 0x8, scoped, tag = 'scoped memory for tpu_custom_call.1']
    #allocation7 [shape = 'u8[8192]{0}', space=vmem, size = 0x2000, scoped, tag = 'input window, operand 2, single buffered']
    #allocation8 [shape = 'u8[2048]{0}', space=vmem, size = 0x800, scoped, tag = 'output window, operand 0']
    %8 = vsyncpa [#allocation3], 0
    %s9 = scalar_lea.sflag [#allocation3], 1
    %10 = vsyncpa %s9, 0
    %11 = vsyncpa [#allocation6], 0
    %s12 = scalar_lea.sflag [#allocation6], 1
    %13 = vsyncpa %s12, 0
    %14 = vsyncpa [#allocation4], 0
    %s15 = scalar_lea.sflag [#allocation4], 1
    %16 = vsyncpa %s15, 0
    loop: start=0, step=1, limit=4
    $region2: #{tpu_custom_call.1} parent=1 // loop_pre_header
      _
    $region3: #{tpu_custom_call.1} parent=1 // loop_header
      %s18 = sphi 0, %s22
      %p19 = scmp.ge.s32.totalorder %s18, 4
      %s28 = sphi 0, %s30
      %s31 = sphi 0, %s28
      %s32 = sphi 0, %s31
      %s48 = sphi 0, %s32
      %s54 = sphi 0, %s56
      %s57 = sphi 0, %s54
      %s58 = sphi 0, %s57
      %s74 = sphi 0, %s58
      %s78 = sphi 0, %s78
      %s80 = sphi 0, %s78
      %s81 = sphi 0, %s80
      %s95 = sphi 0, %s81
      %s101 = sphi 0, %s103
      %s104 = sphi 0, %s101
      %s105 = sphi 0, %s104
      %s121 = sphi 0, %s105
    $region4: #{tpu_custom_call.1} parent=1 // loop_header_branch
      %21 = sbr.rel (%p19) target = $region8
    $region5: #{tpu_custom_call.1} parent=1 // loop_body
      %s23 = ssub.s32 %s18, 1
      %s24 = ssub.s32 %s18, 2
      %s25 = sadd.s32 %s18, 1
      %s26 = ssub.s32 %s18, %s25
      %p27 = scmp.eq.s32.totalorder %s26, 0
      %s29 = sadd.s32 %s28, 1
      %s30 = scalar_select %p27, %s28, %s29
      %p33 = pneg %p27
      %p34 = scmp.eq.s32.totalorder %s18, 1
      %p35 = por %p33, %p34
      %p36 = scmp.ne.s32.totalorder %s28, %s31
      %p37 = scmp.eq.s32.totalorder %s18, 0
      %p38 = por %p36, %p37
      %p39 = scmp.ne.s32.totalorder %s28, %s31
      %p40 = scmp.eq.s32.totalorder %s23, 1
      %p41 = por %p39, %p40
      %p42 = scmp.ne.s32.totalorder %s31, %s32
      %p43 = scmp.eq.s32.totalorder %s23, 0
      %p44 = por %p42, %p43
      %p45 = scmp.ne.s32.totalorder %s31, %s32
      %p46 = scmp.eq.s32.totalorder %s24, 1
      %p47 = por %p45, %p46
      %p49 = scmp.ne.s32.totalorder %s32, %s48
      %p50 = scmp.eq.s32.totalorder %s24, 0
      %p51 = por %p49, %p50
      %s52 = ssub.s32 %s18, %s25
      %p53 = scmp.eq.s32.totalorder %s52, 0
      %s55 = sadd.s32 %s54, 1
      %s56 = scalar_select %p53, %s54, %s55
      %p59 = pneg %p53
      %p60 = scmp.eq.s32.totalorder %s18, 1
      %p61 = por %p59, %p60
      %p62 = scmp.ne.s32.totalorder %s54, %s57
      %p63 = scmp.eq.s32.totalorder %s18, 0
      %p64 = por %p62, %p63
      %p65 = scmp.ne.s32.totalorder %s54, %s57
      %p66 = scmp.eq.s32.totalorder %s23, 1
      %p67 = por %p65, %p66
      %p68 = scmp.ne.s32.totalorder %s57, %s58
      %p69 = scmp.eq.s32.totalorder %s23, 0
      %p70 = por %p68, %p69
      %p71 = scmp.ne.s32.totalorder %s57, %s58
      %p72 = scmp.eq.s32.totalorder %s24, 1
      %p73 = por %p71, %p72
      %p75 = scmp.ne.s32.totalorder %s58, %s74
      %p76 = scmp.eq.s32.totalorder %s24, 0
      %p77 = por %p75, %p76
      %s79 = sadd.s32 %s78, 1
      %p82 = scmp.eq.s32.totalorder %s18, 1
      %p83 = scmp.ne.s32.totalorder %s78, %s80
      %p84 = scmp.eq.s32.totalorder %s18, 0
      %p85 = por %p83, %p84
      %p86 = scmp.ne.s32.totalorder %s78, %s80
      %p87 = scmp.eq.s32.totalorder %s23, 1
      %p88 = por %p86, %p87
      %p89 = scmp.ne.s32.totalorder %s80, %s81
      %p90 = scmp.eq.s32.totalorder %s23, 0
      %p91 = por %p89, %p90
      %p92 = scmp.ne.s32.totalorder %s80, %s81
      %p93 = scmp.eq.s32.totalorder %s24, 1
      %p94 = por %p92, %p93
      %p96 = scmp.ne.s32.totalorder %s81, %s95
      %p97 = scmp.eq.s32.totalorder %s24, 0
      %p98 = por %p96, %p97
      %s99 = ssub.s32 %s18, %s25
      %p100 = scmp.eq.s32.totalorder %s99, 0
      %s102 = sadd.s32 %s101, 1
      %s103 = scalar_select %p100, %s101, %s102
      %p106 = pneg %p100
      %p107 = scmp.eq.s32.totalorder %s18, 1
      %p108 = por %p106, %p107
      %p109 = scmp.ne.s32.totalorder %s101, %s104
      %p110 = scmp.eq.s32.totalorder %s18, 0
      %p111 = por %p109, %p110
      %p112 = scmp.ne.s32.totalorder %s101, %s104
      %p113 = scmp.eq.s32.totalorder %s23, 1
      %p114 = por %p112, %p113
      %p115 = scmp.ne.s32.totalorder %s104, %s105
      %p116 = scmp.eq.s32.totalorder %s23, 0
      %p117 = por %p115, %p116
      %p118 = scmp.ne.s32.totalorder %s104, %s105
      %p119 = scmp.eq.s32.totalorder %s24, 1
      %p120 = por %p118, %p119
      %p122 = scmp.ne.s32.totalorder %s105, %s121
      %p123 = scmp.eq.s32.totalorder %s24, 0
      %p124 = por %p122, %p123
      %p125 = scmp.le.s32.totalorder 1, %s18
      %p126 = scmp.lt.s32.totalorder %s18, 3
      %p127 = pnand %p125, %p126
      %p128 = pneg %p127
      // Predicated region
      $region9: #{tpu_custom_call.1} parent=5 // pred_check
        _
      $region10: #{tpu_custom_call.1} parent=5 // pred_check_branch
        %130 = sbr.rel (%p127) target = $region12
      $region11: #{tpu_custom_call.1} parent=5 // pred_region
        %s131 = ssub.s32 %s18, 1
        // Predicated region
        $region13: #{tpu_custom_call.1} parent=11 // pred_check
          %p132 = pneg %p91
        $region14: #{tpu_custom_call.1} parent=11 // pred_check_branch
          %134 = sbr.rel (%p132) target = $region16
        $region15: #{tpu_custom_call.1} parent=11 // pred_region
          %s136 = ssub.s32 256, 256
          %137 = vsyncadd [#allocation6], %s136
          %s138 = sshll.u32 [#allocation7], 4
          %s139 = int_to_ptr.vmem [resolvable:$true] %s138
          %144 = dma.hbm_to_vmem [thread:$0]  %s2, 256, %s139, [#allocation6], 128, 128, 8
        $region16: #{tpu_custom_call.1} parent=11 // pred_fallthru
          _
      $region12: #{tpu_custom_call.1} parent=5 // pred_fallthru
        _
      %p145 = scmp.lt.s32.totalorder %s18, 2
      // Predicated region
      $region17: #{tpu_custom_call.1} parent=5 // pred_check
        %p146 = pneg %p145
      $region18: #{tpu_custom_call.1} parent=5 // pred_check_branch
        %148 = sbr.rel (%p146) target = $region20
      $region19: #{tpu_custom_call.1} parent=5 // pred_region
        // Predicated region
        $region21: #{tpu_custom_call.1} parent=19 // pred_check
          %p149 = pneg %p38
        $region22: #{tpu_custom_call.1} parent=19 // pred_check_branch
          %151 = sbr.rel (%p149) target = $region24
        $region23: #{tpu_custom_call.1} parent=19 // pred_region
          %s152 = sand.u32 %s28, 1
          %s153 = scalar_lea.sflag [#allocation3], %s152
          %s154 = sand.u32 %s28, 1
          %s155 = smul.addr %s154, 2
          %s156 = scalar_lea.vmem [#allocation2], %s155
          %s157 = smul.u32 2, %s18
          %s158 = ssub.s32 3, %s157
          %p159 = scmp.lt.s32.totalorder %s158, 2
          %s160 = scalar_select %p159, %s158, 2
          %s161 = smul.u32 16, %s160
          %s163 = ssub.s32 32, %s161
          %164 = vsyncadd %s153, %s163
          %p165 = scmp.ne.s32.totalorder 0, %s161
          %s166 = smul.addr %s157, 16
          %s167 = scalar_lea.hbm %s0, %s166
          %s168 = sshll.u32 %s160, 4
          %s169 = sshll.u32 %s156, 4
          %s170 = int_to_ptr.vmem [resolvable:$true] %s169
          %172 = dma.hbm_to_vmem [thread:$0]  (%p165), %s167, %s168, %s170, %s153
        $region24: #{tpu_custom_call.1} parent=19 // pred_fallthru
          _
        // Predicated region
        $region25: #{tpu_custom_call.1} parent=19 // pred_check
          %p173 = pneg %p64
        $region26: #{tpu_custom_call.1} parent=19 // pred_check_branch
          %175 = sbr.rel (%p173) target = $region28
        $region27: #{tpu_custom_call.1} parent=19 // pred_region
          %s176 = sand.u32 %s18, 1
          %s177 = scalar_lea.sflag [#allocation6], %s176
          %s178 = sand.u32 %s54, 1
          %s179 = smul.addr %s178, 16
          %s180 = scalar_lea.vmem [#allocation5], %s179
          %s181 = smul.u32 2, %s18
          %s182 = ssub.s32 3, %s181
          %p183 = scmp.lt.s32.totalorder %s182, 2
          %s184 = scalar_select %p183, %s182, 2
          %s185 = smul.u32 128, %s184
          %s187 = ssub.s32 256, %s185
          %188 = vsyncadd %s177, %s187
          %p189 = scmp.ne.s32.totalorder 0, %s185
          %s190 = smul.addr %s181, 128
          %s191 = scalar_lea.hbm %s1, %s190
          %s192 = smul.u32 %s184, 8
          %s193 = sshll.u32 %s192, 4
          %s194 = sshll.u32 %s180, 4
          %s195 = int_to_ptr.vmem [resolvable:$true] %s194
          %197 = dma.hbm_to_vmem [thread:$0]  (%p189), %s191, %s193, %s195, %s177
        $region28: #{tpu_custom_call.1} parent=19 // pred_fallthru
          _
      $region20: #{tpu_custom_call.1} parent=5 // pred_fallthru
        _
      %p198 = scmp.le.s32.totalorder 1, %s18
      %p199 = scmp.lt.s32.totalorder %s18, 3
      %p200 = pnand %p198, %p199
      %p201 = pneg %p200
      // Predicated region
      $region29: #{tpu_custom_call.1} parent=5 // pred_check
        _
      $region30: #{tpu_custom_call.1} parent=5 // pred_check_branch
        %203 = sbr.rel (%p200) target = $region32
      $region31: #{tpu_custom_call.1} parent=5 // pred_region
        %s204 = ssub.s32 %s18, 1
        %s205 = sand.u32 %s31, 1
        %s206 = scalar_lea.sflag [#allocation3], %s205
        %s207 = sand.u32 %s31, 1
        %s208 = smul.addr %s207, 2
        %s209 = scalar_lea.vmem [#allocation2], %s208
        // Predicated region
        $region33: #{tpu_custom_call.1} parent=31 // pred_check
          %p210 = pneg %p44
        $region34: #{tpu_custom_call.1} parent=31 // pred_check_branch
          %212 = sbr.rel (%p210) target = $region36
        $region35: #{tpu_custom_call.1} parent=31 // pred_region
          %213 = dma.done %s206, 32
        $region36: #{tpu_custom_call.1} parent=31 // pred_fallthru
          _
        %s214 = sand.u32 %s23, 1
        %s215 = scalar_lea.sflag [#allocation6], %s214
        %s216 = sand.u32 %s57, 1
        %s217 = smul.addr %s216, 16
        %s218 = scalar_lea.vmem [#allocation5], %s217
        // Predicated region
        $region37: #{tpu_custom_call.1} parent=31 // pred_check
          %p219 = pneg %p70
        $region38: #{tpu_custom_call.1} parent=31 // pred_check_branch
          %221 = sbr.rel (%p219) target = $region40
        $region39: #{tpu_custom_call.1} parent=31 // pred_region
          %222 = dma.done %s215, 256
        $region40: #{tpu_custom_call.1} parent=31 // pred_fallthru
          _
        // Predicated region
        $region41: #{tpu_custom_call.1} parent=31 // pred_check
          %p223 = pneg %p91
        $region42: #{tpu_custom_call.1} parent=31 // pred_check_branch
          %225 = sbr.rel (%p223) target = $region44
        $region43: #{tpu_custom_call.1} parent=31 // pred_region
          %226 = dma.done [#allocation6], 256
        $region44: #{tpu_custom_call.1} parent=31 // pred_fallthru
          _
        %s227 = sand.u32 %s31, 1
        %s228 = scalar_lea.sflag [#allocation3], %s227
        %s229 = sand.u32 %s31, 1
        %s230 = smul.addr %s229, 2
        %s231 = scalar_lea.vmem [#allocation2], %s230
        %p232 = pneg %p44
        %p233 = pneg %p41
        %s234 = sand.u32 %s23, 1
        %s235 = scalar_lea.sflag [#allocation6], %s234
        %s236 = sand.u32 %s57, 1
        %s237 = smul.addr %s236, 16
        %s238 = scalar_lea.vmem [#allocation5], %s237
        %p239 = pneg %p70
        %p240 = pneg %p67
        %p241 = pneg %p91
        %p242 = pneg %p88
        %p243 = pneg %p117
        %p244 = pneg %p114
        %s245 = sand.u32 %s104, 1
        %s246 = scalar_lea.sflag [#allocation4], %s245
        %s247 = sand.u32 %s104, 1
        %s248 = smul.addr %s247, 2
        %s249 = scalar_lea.vmem [#allocation8], %s248
        %s250 = smul.u32 2, %s23
        %s251 = ssub.s32 3, %s250
        %p252 = scmp.lt.s32.totalorder %s251, 2
        %s253 = scalar_select %p252, %s251, 2
        %s254 = smul.u32 16, %s253
        %s255 = smul.u32 2, %s23
        %s256 = ssub.s32 3, %s255
        %p257 = scmp.lt.s32.totalorder %s256, 2
        %s258 = scalar_select %p257, %s256, 2
        %s259 = smul.u32 128, %s258
        %s260 = smul.u32 2, %s23
        %s261 = ssub.s32 3, %s260
        %p262 = scmp.lt.s32.totalorder %s261, 2
        %s263 = scalar_select %p262, %s261, 2
        %s264 = smul.u32 16, %s263
        %v265 = vlaneseq
        %v266 = vshrl.u32 %v265, 7
        %v267 = vadd.s32 %v266, 8
        %v268 = vadd.s32 %v266, 16
        %v269 = vadd.s32 %v266, 24
        %v270 = vadd.s32 %v266, 32
        %v271 = vadd.s32 %v266, 40
        %v272 = vadd.s32 %v266, 48
        %v273 = vadd.s32 %v266, 56
        %v274 = vadd.s32 %v266, 64
        %v275 = vadd.s32 %v266, 72
        %v276 = vadd.s32 %v266, 80
        %v277 = vadd.s32 %v266, 88
        %v278 = vld [vmem:[%s209] sm:$0x3]
        %v279 = vlaneseq
        %v280 = vshrl.u32 %v279, 7
        %v281 = vsub.s32 0, %v280
        %v282 = vrot.slane %v278, %v281
        %v283 = vlaneseq
        %v284 = vshrl.u32 %v283, 7
        %v285 = vsub.s32 1, %v284
        %v286 = vrot.slane %v278, %v285
        %vm287 = vcmp.eq.s32.totalorder %v266, %v282
        %vm288 = vcmp.eq.s32.totalorder %v266, %v286
        %vm289 = vcmp.eq.s32.totalorder %v267, %v282
        %vm290 = vcmp.eq.s32.totalorder %v267, %v286
        %vm291 = vcmp.eq.s32.totalorder %v268, %v282
        %vm292 = vcmp.eq.s32.totalorder %v268, %v286
        %vm293 = vcmp.eq.s32.totalorder %v269, %v282
        %vm294 = vcmp.eq.s32.totalorder %v269, %v286
        %vm295 = vcmp.eq.s32.totalorder %v270, %v282
        %vm296 = vcmp.eq.s32.totalorder %v270, %v286
        %vm297 = vcmp.eq.s32.totalorder %v271, %v282
        %vm298 = vcmp.eq.s32.totalorder %v271, %v286
        %vm299 = vcmp.eq.s32.totalorder %v272, %v282
        %vm300 = vcmp.eq.s32.totalorder %v272, %v286
        %vm301 = vcmp.eq.s32.totalorder %v273, %v282
        %vm302 = vcmp.eq.s32.totalorder %v273, %v286
        %vm303 = vcmp.eq.s32.totalorder %v274, %v282
        %vm304 = vcmp.eq.s32.totalorder %v274, %v286
        %vm305 = vcmp.eq.s32.totalorder %v275, %v282
        %vm306 = vcmp.eq.s32.totalorder %v275, %v286
        %vm307 = vcmp.eq.s32.totalorder %v276, %v282
        %vm308 = vcmp.eq.s32.totalorder %v276, %v286
        %vm309 = vcmp.eq.s32.totalorder %v277, %v282
        %vm310 = vcmp.eq.s32.totalorder %v277, %v286
        %v311 = vsel %vm287, 1, 0
        %v312 = vsel %vm288, 1, 0
        %v313 = vsel %vm289, 1, 0
        %v314 = vsel %vm290, 1, 0
        %v315 = vsel %vm291, 1, 0
        %v316 = vsel %vm292, 1, 0
        %v317 = vsel %vm293, 1, 0
        %v318 = vsel %vm294, 1, 0
        %v319 = vsel %vm295, 1, 0
        %v320 = vsel %vm296, 1, 0
        %v321 = vsel %vm297, 1, 0
        %v322 = vsel %vm298, 1, 0
        %v323 = vsel %vm299, 1, 0
        %v324 = vsel %vm300, 1, 0
        %v325 = vsel %vm301, 1, 0
        %v326 = vsel %vm302, 1, 0
        %v327 = vsel %vm303, 1, 0
        %v328 = vsel %vm304, 1, 0
        %v329 = vsel %vm305, 1, 0
        %v330 = vsel %vm306, 1, 0
        %v331 = vsel %vm307, 1, 0
        %v332 = vsel %vm308, 1, 0
        %v333 = vsel %vm309, 1, 0
        %v334 = vsel %vm310, 1, 0
        %v335 = vcvt.s32.f32 %v311
        %v336 = vcvt.s32.f32 %v312
        %v337 = vcvt.s32.f32 %v313
        %v338 = vcvt.s32.f32 %v314
        %v339 = vcvt.s32.f32 %v315
        %v340 = vcvt.s32.f32 %v316
        %v341 = vcvt.s32.f32 %v317
        %v342 = vcvt.s32.f32 %v318
        %v343 = vcvt.s32.f32 %v319
        %v344 = vcvt.s32.f32 %v320
        %v345 = vcvt.s32.f32 %v321
        %v346 = vcvt.s32.f32 %v322
        %v347 = vcvt.s32.f32 %v323
        %v348 = vcvt.s32.f32 %v324
        %v349 = vcvt.s32.f32 %v325
        %v350 = vcvt.s32.f32 %v326
        %v351 = vcvt.s32.f32 %v327
        %v352 = vcvt.s32.f32 %v328
        %v353 = vcvt.s32.f32 %v329
        %v354 = vcvt.s32.f32 %v330
        %v355 = vcvt.s32.f32 %v331
        %v356 = vcvt.s32.f32 %v332
        %v357 = vcvt.s32.f32 %v333
        %v358 = vcvt.s32.f32 %v334
        %v359 = vld [vmem:[#allocation7] sm:$0xff]
        %v360 = vld [vmem:[#allocation7 + $0x8] sm:$0x1]
        %vm361 = vcmask 785408
        %v363 = vsel %vm361, %v359, 0
        %v366 = vsel %vm361, %v360, 0
        %368 = vmatprep.subr.mxu0 %v336
        %369 = vmatpush1.msra.mxu0 %v335
        %370 = vmatprep.subr.mxu0 %v338
        %371 = vmatpush1.msra.mxu0 %v337
        %372 = vmatprep.subr.mxu0 %v340
        %373 = vmatpush1.msra.mxu0 %v339
        %374 = vmatprep.subr.mxu0 %v342
        %375 = vmatpush1.msra.mxu0 %v341
        %376 = vmatprep.subr.mxu0 %v344
        %377 = vmatpush1.msra.mxu0 %v343
        %378 = vmatprep.subr.mxu0 %v346
        %379 = vmatpush1.msra.mxu0 %v345
        %380 = vmatprep.subr.mxu0 %v348
        %381 = vmatpush1.msra.mxu0 %v347
        %382 = vmatprep.subr.mxu0 %v350
        %383 = vmatpush1.msra.mxu0 %v349
        %384 = vmatprep.subr.mxu0 %v352
        %385 = vmatpush1.msra.mxu0 %v351
        %386 = vmatprep.subr.mxu0 %v354
        %387 = vmatpush1.msra.mxu0 %v353
        %388 = vmatprep.subr.mxu0 %v356
        %389 = vmatpush1.msra.mxu0 %v355
        %390 = vmatprep.subr.mxu0 %v358
        %391 = vmatpush1.msra.mxu0 %v357
        %392 = vmatprep.subr.mxu0 0.0
        %393 = vmatpush1.msra.mxu0 0.0
        %394 = vmatprep.subr.mxu0 0.0
        %395 = vmatpush1.msra.mxu0 0.0
        %396 = vmatprep.subr.mxu0 0.0
        %397 = vmatpush1.msra.mxu0 0.0
        %398 = vmatprep.subr.mxu0 0.0
        %399 = vmatpush1.msra.mxu0 0.0
        %400 = vmatprep.subr.mxu0 0.0
        %401 = vmatpush1.msra.mxu0 0.0
        %402 = vmatprep.subr.mxu0 0.0
        %403 = vmatpush1.msra.mxu0 0.0
        %404 = vmatprep.subr.mxu0 0.0
        %405 = vmatpush1.msra.mxu0 0.0
        %406 = vmatprep.subr.mxu0 0.0
        %407 = vmatpush1.msra.mxu0 0.0
        %408 = vmatprep.subr.mxu0 0.0
        %409 = vmatpush1.msra.mxu0 0.0
        %410 = vmatprep.subr.mxu0 0.0
        %411 = vmatpush1.msra.mxu0 0.0
        %412 = vmatprep.subr.mxu0 0.0
        %413 = vmatpush1.msra.mxu0 0.0
        %414 = vmatprep.subr.mxu0 0.0
        %415 = vmatpush1.msra.mxu0 0.0
        %416 = vmatprep.subr.mxu0 0.0
        %417 = vmatpush1.msra.mxu0 0.0
        %418 = vmatprep.subr.mxu0 0.0
        %419 = vmatpush1.msra.mxu0 0.0
        %420 = vmatprep.subr.mxu0 0.0
        %421 = vmatpush1.msra.mxu0 0.0
        %422 = vmatprep.subr.mxu0 0.0
        %423 = vmatpush1.msra.mxu0 0.0
        %424 = vmatprep.subr.mxu0 0.0
        %425 = vmatpush1.msra.mxu0 0.0
        %426 = vmatprep.subr.mxu0 0.0
        %427 = vmatpush1.msra.mxu0 0.0
        %428 = vmatprep.subr.mxu0 0.0
        %429 = vmatpush1.msra.mxu0 0.0
        %430 = vmatprep.subr.mxu0 0.0
        %431 = vmatpush1.msra.mxu0 0.0
        %432 = vmatprep.mubr.f32.mxu0 0.0
        %433 = vmatmul.mubr.f32.gmra.mrb[0].mxu0 %v363
        %v434 = vpop.f32.mrb[0].mxu0
        %v435 = vadd.f32 0.0, %v434
        %v436 = vpop.f32.mrb[0].mxu0
        %v437 = vadd.f32 0.0, %v436
        %438 = vmatprep.mubr.f32.mxu0 0.0
        %439 = vmatmul.mubr.f32.gmra.mrb[0].mxu0 %v366
        %v440 = vpop.f32.mrb[0].mxu0
        %v441 = vadd.f32 0.0, %v440
        %v442 = vpop.f32.mrb[0].mxu0
        %v443 = vadd.f32 0.0, %v442
        %444 = vdwg.mxu0
        %v445 = vld [vmem:[%s218] sm:$0xff]
        %v446 = vld [vmem:[%s218 + $0x8] sm:$0xff]
        %v447 = vmul.f32 %v435, %v445
        %v448 = vmul.f32 %v437, %v446
        %v449 = vrot.slane %v447, 4
        %v450 = vadd.f32 %v447, %v449
        %v451 = vrot.slane %v450, 2
        %v452 = vadd.f32 %v450, %v451
        %v453 = vrot.slane %v452, 1
        %v454 = vadd.f32 %v452, %v453
        %v455 = vrot.slane %v448, 4
        %v456 = vadd.f32 %v448, %v455
        %v457 = vrot.slane %v456, 2
        %v458 = vadd.f32 %v456, %v457
        %v459 = vrot.slane %v458, 1
        %v460 = vadd.f32 %v458, %v459
        %v461 = vadd.f32 %v454, %v441
        %v462 = vadd.f32 %v460, %v443
        %v465 = vcombine.low %v461, %v462
        %v467 = vunpack.c.l.s4 1966171168
        %v468 = vunpack.c.0.s8 %v467
        %v469 = vlaneseq
        %v470 = vshrl.u32 %v469, 7
        %v471 = vsub.s32 %v468, %v470
        %v472 = vrot.slane %v465, %v471
        %v474 = vunpack.c.l.s4 1966171168
        %v475 = vunpack.c.0.s8 %v474
        %v476 = vlaneseq
        %v477 = vshrl.u32 %v476, 7
        %v478 = vsub.s32 %v475, %v477
        %v479 = vrot.slane %v472, %v478
        %v481 = vlaneseq
        %vm482 = vcmp.ge.s32.totalorder %v481, 0
        %vm483 = vcmp.lt.s32.totalorder %v481, 256
        %vm484 = vmand %vm482, %vm483
        %485 = vst.msk [vmem:[%s249] sm:$0x3] %vm484, %v479
        %s486 = sand.u32 %s104, 1
        %s487 = scalar_lea.sflag [#allocation4], %s486
        %s488 = sand.u32 %s104, 1
        %s489 = smul.addr %s488, 2
        %s490 = scalar_lea.vmem [#allocation8], %s489
        // Predicated region
        $region45: #{tpu_custom_call.1} parent=31 // pred_check
          %p491 = pneg %p114
        $region46: #{tpu_custom_call.1} parent=31 // pred_check_branch
          %493 = sbr.rel (%p491) target = $region48
        $region47: #{tpu_custom_call.1} parent=31 // pred_region
          %s494 = smul.u32 2, %s23
          %s495 = ssub.s32 3, %s494
          %p496 = scmp.lt.s32.totalorder %s495, 2
          %s497 = scalar_select %p496, %s495, 2
          %s498 = smul.u32 16, %s497
          %s500 = ssub.s32 32, %s498
          %501 = vsyncadd %s487, %s500
          %p502 = scmp.ne.s32.totalorder 0, %s498
          %s503 = smul.addr %s494, 16
          %s504 = scalar_lea.hbm %s3, %s503
          %s505 = sshll.u32 %s497, 4
          %s506 = sshll.u32 %s490, 4
          %s507 = int_to_ptr.vmem [resolvable:$true] %s506
          %509 = dma.vmem_to_hbm [thread:$0]  (%p502), %s507, %s505, %s504, %s487
        $region48: #{tpu_custom_call.1} parent=31 // pred_fallthru
          _
      $region32: #{tpu_custom_call.1} parent=5 // pred_fallthru
        _
      %p510 = scmp.le.s32.totalorder 2, %s18
      // Predicated region
      $region49: #{tpu_custom_call.1} parent=5 // pred_check
        %p511 = pneg %p510
      $region50: #{tpu_custom_call.1} parent=5 // pred_check_branch
        %513 = sbr.rel (%p511) target = $region52
      $region51: #{tpu_custom_call.1} parent=5 // pred_region
        %s514 = ssub.s32 %s18, 2
        // Predicated region
        $region53: #{tpu_custom_call.1} parent=51 // pred_check
          %p515 = pneg %p120
        $region54: #{tpu_custom_call.1} parent=51 // pred_check_branch
          %517 = sbr.rel (%p515) target = $region56
        $region55: #{tpu_custom_call.1} parent=51 // pred_region
          %s518 = sand.u32 %s105, 1
          %s519 = scalar_lea.sflag [#allocation4], %s518
          %s520 = sand.u32 %s105, 1
          %s521 = smul.addr %s520, 2
          %s522 = scalar_lea.vmem [#allocation8], %s521
          %523 = dma.done %s519, 32
        $region56: #{tpu_custom_call.1} parent=51 // pred_fallthru
          _
      $region52: #{tpu_custom_call.1} parent=5 // pred_fallthru
        _
    $region6: #{tpu_custom_call.1} parent=1 // loop_footer
      %s22 = sadd.s32 1, %s18
    $region7: #{tpu_custom_call.1} parent=1 // loop_footer_branch
      %17 = sbr.rel target = $region3
    $region8: #{tpu_custom_call.1} parent=1 // loop_exit
      _
    %524 = vsyncpa [#allocation3], 1
    %s525 = scalar_lea.sflag [#allocation3], 1
    %526 = vsyncpa %s525, 1
    %527 = vsyncpa [#allocation6], 1
    %s528 = scalar_lea.sflag [#allocation6], 1
    %529 = vsyncpa %s528, 1
    %530 = vsyncpa [#allocation4], 1
    %s531 = scalar_lea.sflag [#allocation4], 1
    %532 = vsyncpa %s531, 1

</llo_original>
